<compile_context>
chip_gen: v7x
topology: tpu7x:2x2x1
jax: 0.10.0
libtpu: 0.0.40
codegen_flags: <defaults>
</compile_context>

<pallas_src>
import functools
import math

import jax
import jax.numpy as jnp
import numpy as np
from jax.experimental import pallas as pl
from jax.experimental.pallas import tpu as pltpu

LANE = 128
_BN_EPS = 1e-5
_SQRT2_INV = 1.0 / math.sqrt(2.0)


def _round_up(x, m):
    return ((x + m - 1) // m) * m


def _vmem_capacity_bytes():
    """Per-core VMEM capacity (v5e/v6e: 128 MiB, v7x: 64 MiB); safe fallback."""
    cap = 64 * 1024 * 1024
    try:
        info = pltpu.get_tpu_info()
        cap = int(getattr(info, "vmem_capacity_bytes", cap))
    except Exception:
        pass
    return max(cap, 32 * 1024 * 1024)


# ---------------------------------------------------------------------------
# Kernels
# ---------------------------------------------------------------------------
def _gcn_layer_kernel(a_ref,        # VMEM (T, T)      Â (i, k) tile (stream dtype)
                      feat_ref,     # VMEM (T, Cpad)   feature K-tile
                      w_ref,        # VMEM (Cpad,Cpad) (in,out) weight (resident)
                      scale_ref,    # VMEM (1, Cpad)   folded BN scale (f32)
                      shift_ref,    # VMEM (1, Cpad)   folded bias+BN shift (f32)
                      *rest,        # [res_ref (T,Cpad)], o_ref (T,Cpad), acc (T,Cpad) f32
                      with_residual, res_scale):
    """One fused layer over a (row-tile i, K-tile k) grid.

    Every k step:   acc[i] += Â[i, k] @ X[k]        (f32 accumulator)
    Last k step:    out[i] = epilogue(acc[i] @ W)   (BN + ReLU [+ residual])
    """
    if with_residual:
        res_ref, o_ref, acc_ref = rest
    else:
        o_ref, acc_ref = rest

    k = pl.program_id(1)

    @pl.when(k == 0)
    def _():
        acc_ref[...] = jnp.zeros_like(acc_ref)

    # Dots run in the streamed dtype (bf16 stays on the fast MXU path), f32 acc.
    acc_ref[...] += jnp.dot(a_ref[...], feat_ref[...],
                            preferred_element_type=jnp.float32)

    @pl.when(k == pl.num_programs(1) - 1)
    def _():
        # agg @ W runs once per row tile (not per K step) — avoids swapping the
        # MXU between two RHS operands every grid step.
        z = jnp.dot(acc_ref[...].astype(w_ref.dtype), w_ref[...],
                    preferred_element_type=jnp.float32)
        h = jnp.maximum(z * scale_ref[...] + shift_ref[...], 0.0)
        if with_residual:
            h = (h + res_ref[...].astype(jnp.float32)) * res_scale
        o_ref[...] = h.astype(o_ref.dtype)


def _fused_block_kernel(a_ref, x_ref, w1_ref, s1_ref, t1_ref,
                        w2_ref, s2_ref, t2_ref, o_ref, *, res_scale):
    """Whole ResHybridBlock in one kernel (small graphs: Â, X, h1 stay in VMEM).

    Padded rows of h1 equal relu(shift1) but Â's padded columns are zero, so
    they cannot contaminate layer 2; padded channels are exactly zero.
    """
    a = a_ref[...]
    x = x_ref[...]

    z1 = jnp.dot(jnp.dot(a, x, preferred_element_type=jnp.float32
                         ).astype(w1_ref.dtype),
                 w1_ref[...], preferred_element_type=jnp.float32)
    h1 = jnp.maximum(z1 * s1_ref[...] + t1_ref[...], 0.0)

    z2 = jnp.dot(jnp.dot(a, h1.astype(a.dtype), preferred_element_type=jnp.float32
                         ).astype(w2_ref.dtype),
                 w2_ref[...], preferred_element_type=jnp.float32)
    h2 = jnp.maximum(z2 * s2_ref[...] + t2_ref[...], 0.0)

    o_ref[...] = ((h2 + x.astype(jnp.float32)) * res_scale).astype(o_ref.dtype)


# ---------------------------------------------------------------------------
# pallas_call wrappers
# ---------------------------------------------------------------------------
def _gcn_layer(a_pad, feat_pad, w, scale, shift, *, residual=None,
               res_scale=1.0, tile, out_dtype, vmem_limit_bytes):
    npad = a_pad.shape[0]
    cpad = w.shape[1]
    grid = (npad // tile, npad // tile)

    kernel = functools.partial(_gcn_layer_kernel,
                               with_residual=residual is not None,
                               res_scale=res_scale)

    # TODO(synk): add pipeline_mode=pl.Buffered(1) on the three constant
    # index_map residents (w/scale/shift) where supported, to drop their
    # second pipeline buffer on v7x's 64 MiB VMEM.
    in_specs = [
        pl.BlockSpec((tile, tile), lambda i, k: (i, k)),   # Â (i, k) tile
        pl.BlockSpec((tile, cpad), lambda i, k: (k, 0)),   # feature K-tile
        pl.BlockSpec((cpad, cpad), lambda i, k: (0, 0)),   # W (resident)
        pl.BlockSpec((1, cpad), lambda i, k: (0, 0)),      # BN scale
        pl.BlockSpec((1, cpad), lambda i, k: (0, 0)),      # BN shift
    ]
    args = [a_pad, feat_pad, w, scale, shift]
    if residual is not None:
        in_specs.append(pl.BlockSpec((tile, cpad), lambda i, k: (i, 0)))
        args.append(residual)

    s_item = a_pad.dtype.itemsize
    flops = 2 * npad * npad * cpad + 2 * npad * cpad * cpad
    bytes_accessed = (npad * npad * s_item                      # Â streamed once
                      + (npad // tile) * npad * cpad * s_item   # feats per row tile
                      + cpad * cpad * s_item
                      + npad * cpad * jnp.dtype(out_dtype).itemsize
                      + (npad * cpad * s_item if residual is not None else 0))

    return pl.pallas_call(
        kernel,
        out_shape=jax.ShapeDtypeStruct((npad, cpad), out_dtype),
        grid=grid,
        in_specs=in_specs,
        out_specs=pl.BlockSpec((tile, cpad), lambda i, k: (i, 0)),
        scratch_shapes=[pltpu.VMEM((tile, cpad), jnp.float32)],
        compiler_params=pltpu.CompilerParams(
            dimension_semantics=("parallel", "arbitrary"),
            vmem_limit_bytes=vmem_limit_bytes),
        cost_estimate=pl.CostEstimate(flops=int(flops), transcendentals=0,
                                      bytes_accessed=int(bytes_accessed)),
    )(*args)


def _fused_block(a_pad, x_pad, params, *, out_dtype, res_scale, vmem_limit_bytes):
    npad = a_pad.shape[0]
    cpad = params["cpad"]
    w1, s1, t1 = params["layer1"]
    w2, s2, t2 = params["layer2"]

    s_item = a_pad.dtype.itemsize
    flops = 2 * (2 * npad * npad * cpad + 2 * npad * cpad * cpad)
    bytes_accessed = (npad * npad * s_item + 2 * npad * cpad * s_item
                      + 2 * cpad * cpad * s_item
                      + npad * cpad * jnp.dtype(out_dtype).itemsize)

    def full(shape):
        return pl.BlockSpec(shape, lambda i: (0, 0))

    return pl.pallas_call(
        functools.partial(_fused_block_kernel, res_scale=res_scale),
        out_shape=jax.ShapeDtypeStruct((npad, cpad), out_dtype),
        grid=(1,),
        in_specs=[full((npad, npad)), full((npad, cpad)),
                  full((cpad, cpad)), full((1, cpad)), full((1, cpad)),
                  full((cpad, cpad)), full((1, cpad)), full((1, cpad))],
        out_specs=full((npad, cpad)),
        compiler_params=pltpu.CompilerParams(
            dimension_semantics=("arbitrary",),
            vmem_limit_bytes=vmem_limit_bytes),
        cost_estimate=pl.CostEstimate(flops=int(flops), transcendentals=0,
                                      bytes_accessed=int(bytes_accessed)),
    )(a_pad, x_pad, w1, s1, t1, w2, s2, t2)


# ---------------------------------------------------------------------------
# Wrapper-side prep (hoisted out of the per-call path)
# ---------------------------------------------------------------------------
def build_gcn_adjacency(edge_index, num_nodes):
    """Dense Â = D^-1/2 (A + I) D^-1/2 (PyG gcn_norm, add_remaining_self_loops)."""
    src, dst = edge_index[0], edge_index[1]
    a = jnp.zeros((num_nodes, num_nodes), jnp.float32)
    a = a.at[dst, src].add(1.0)                                  # messages src -> dst
    idx = jnp.arange(num_nodes)
    diag = a[idx, idx]
    a = a.at[idx, idx].set(jnp.where(diag > 0.0, diag, 1.0))     # only *remaining* loops
    deg = jnp.sum(a, axis=1)
    d_inv_sqrt = jax.lax.rsqrt(jnp.maximum(deg, 1e-12))
    return a * d_inv_sqrt[:, None] * d_inv_sqrt[None, :]


def prepare_res_hybrid_gcn_params(w1, b1, bn1_gamma, bn1_beta, bn1_mean, bn1_var,
                                  w2, b2, bn2_gamma, bn2_beta, bn2_mean, bn2_var,
                                  *, compute_dtype=jnp.bfloat16, bn_eps=_BN_EPS):
    """Call-once prep: transpose PyTorch (out,in) weights to (in,out), fold conv
    bias + eval-mode BatchNorm into per-channel scale/shift, zero-pad channels
    to a multiple of 128, and narrow the streamed operands to `compute_dtype`
    (bf16 by default — the kernel is HBM-bound on the dense Â stream)."""
    c = w1.shape[1]
    cpad = _round_up(c, LANE)

    def one(w, b, g, beta, m, v):
        s = g * jax.lax.rsqrt(v + bn_eps)
        shift = (b - m) * s + beta
        w_p = jnp.zeros((cpad, cpad), compute_dtype).at[:c, :c].set(
            jnp.transpose(w).astype(compute_dtype))
        s_p = jnp.zeros((1, cpad), jnp.float32).at[0, :c].set(s.astype(jnp.float32))
        t_p = jnp.zeros((1, cpad), jnp.float32).at[0, :c].set(shift.astype(jnp.float32))
        return w_p, s_p, t_p

    return {"layer1": one(w1, b1, bn1_gamma, bn1_beta, bn1_mean, bn1_var),
            "layer2": one(w2, b2, bn2_gamma, bn2_beta, bn2_mean, bn2_var),
            "channels": c, "cpad": cpad, "dtype": jnp.dtype(compute_dtype)}


def prepare_res_hybrid_graph(edge_index, num_nodes, params, *,
                             tile_cap=512, fuse_small=True):
    """Call-once-per-graph prep: dense normalized adjacency, node padding, path
    selection (fused vs. K-tiled), tile size from the per-generation VMEM
    budget, and the vmem limit. Cache and pass to res_hybrid_block_forward to
    amortize the O(N^2) build across calls / stacked blocks."""
    cpad = params["cpad"]
    stream_dtype = jnp.dtype(params["dtype"])
    s_item = stream_dtype.itemsize

    cap = _vmem_capacity_bytes()
    budget = int(0.85 * cap)
    vmem_limit = int(0.90 * cap)

    npad0 = _round_up(num_nodes, LANE)

    # Fused single-call path when Â, X, h1 and both weights fit comfortably.
    fused_need = (2 * npad0 * npad0 * s_item + 4 * npad0 * cpad * s_item
                  + 4 * cpad * cpad * s_item + 6 * npad0 * cpad * 4
                  + 8 * cpad * 4)
    fused = bool(fuse_small) and fused_need <= int(0.6 * budget)

    if fused:
        tile = npad0
        npad = npad0
    else:
        # K-tiled path: largest square (tile, tile) Â block — multiples of 128
        # so both the lane dim and the sublane dim are native for any streamed
        # dtype packing — whose double-buffered footprint fits the budget.
        tile = LANE
        for cand in (1024, 512, 256, 128):
            if cand > max(tile_cap, LANE) or cand > npad0:
                continue
            need = (2 * cand * cand * s_item        # Â tile
                    + 2 * cand * cpad * s_item      # feature K-tile
                    + 2 * cpad * cpad * s_item      # W (resident, counted x2)
                    + 2 * cand * cpad * s_item      # residual tile (layer 2)
                    + 2 * cand * cpad * 4           # output tile (<= f32)
                    + cand * cpad * 4               # f32 accumulator scratch
                    + 8 * cpad * 4)                 # BN scale / shift
            if need <= budget:
                tile = cand
                break
        npad = _round_up(num_nodes, tile)

    a_norm = build_gcn_adjacency(edge_index, num_nodes)
    a_pad = jnp.zeros((npad, npad), stream_dtype).at[:num_nodes, :num_nodes].set(
        a_norm.astype(stream_dtype))

    return {"a_pad": a_pad, "n": num_nodes, "npad": npad, "tile": tile,
            "fused": fused, "vmem_limit": vmem_limit}


def res_hybrid_block_forward(x, edge_index, params, *, graph=None,
                             tile_cap=512, fuse_small=True):
    """ResHybridBlock forward (GCNConv branch, eval-mode BatchNorm).
    x: (N, C) node features; edge_index: (2, E) int edges. Returns (N, C)."""
    n, c = x.shape
    assert c == params["channels"], "residual requires in_channels == out_channels"
    if graph is None:
        graph = prepare_res_hybrid_graph(edge_index, n, params,
                                         tile_cap=tile_cap, fuse_small=fuse_small)
    assert graph["n"] == n

    cpad = params["cpad"]
    npad = graph["npad"]
    stream_dtype = params["dtype"]
    a_pad = graph["a_pad"]
    vmem_limit = graph["vmem_limit"]

    # Node features padded lane-dense and narrowed to the streamed dtype.
    x_pad = jnp.zeros((npad, cpad), stream_dtype).at[:n, :c].set(
        x.astype(stream_dtype))

    w1, s1, t1 = params["layer1"]
    w2, s2, t2 = params["layer2"]

    if graph["fused"]:
        out = _fused_block(a_pad, x_pad, params, out_dtype=x.dtype,
                           res_scale=_SQRT2_INV, vmem_limit_bytes=vmem_limit)
    else:
        tile = graph["tile"]
        h1 = _gcn_layer(a_pad, x_pad, w1, s1, t1, tile=tile,
                        out_dtype=stream_dtype, vmem_limit_bytes=vmem_limit)
        out = _gcn_layer(a_pad, h1, w2, s2, t2, residual=x_pad,
                         res_scale=_SQRT2_INV, tile=tile,
                         out_dtype=x.dtype, vmem_limit_bytes=vmem_limit)
    return out[:n, :c]


# ---------------------------------------------------------------------------
# Pure-JAX reference (PyTorch eval semantics, GCNConv branch)
# ---------------------------------------------------------------------------
def reference_forward(x, a_norm, w1, b1, g1, beta1, m1, v1,
                      w2, b2, g2, beta2, m2, v2):
    def bn(h, g, beta, m, v):
        return (h - m) / jnp.sqrt(v + _BN_EPS) * g + beta

    h = a_norm @ (x @ w1.T) + b1
    h = jax.nn.relu(bn(h, g1, beta1, m1, v1))
    h = a_norm @ (h @ w2.T) + b2
    h = jax.nn.relu(bn(h, g2, beta2, m2, v2))
    return (h + x) / np.sqrt(2.0)


if __name__ == "__main__":
    key = jax.random.PRNGKey(0)

    def make_problem(k, n, c, e):
        ks = jax.random.split(k, 15)
        x = jax.random.normal(ks[0], (n, c), jnp.float32)
        src = jax.random.randint(ks[1], (e,), 0, n)
        dst = jax.random.randint(ks[2], (e,), 0, n)
        edge_index = jnp.stack([jnp.concatenate([src, dst]),
                                jnp.concatenate([dst, src])]).astype(jnp.int32)
        w1 = 0.2 * jax.random.normal(ks[3], (c, c), jnp.float32)
        b1 = 0.05 * jax.random.normal(ks[4], (c,), jnp.float32)
        w2 = 0.2 * jax.random.normal(ks[5], (c, c), jnp.float32)
        b2 = 0.05 * jax.random.normal(ks[6], (c,), jnp.float32)
        bn1 = (1.0 + 0.1 * jax.random.normal(ks[7], (c,), jnp.float32),
               0.1 * jax.random.normal(ks[8], (c,), jnp.float32),
               0.1 * jax.random.normal(ks[9], (c,), jnp.float32),
               0.5 + jax.random.uniform(ks[10], (c,), jnp.float32))
        bn2 = (1.0 + 0.1 * jax.random.normal(ks[11], (c,), jnp.float32),
               0.1 * jax.random.normal(ks[12], (c,), jnp.float32),
               0.1 * jax.random.normal(ks[13], (c,), jnp.float32),
               0.5 + jax.random.uniform(ks[14], (c,), jnp.float32))
        return x, edge_index, (w1, b1) + bn1, (w2, b2) + bn2

    def check(out, x, edge_index, l1, l2, atol, rtol):
        a_norm = build_gcn_adjacency(edge_index, x.shape[0])
        ref = reference_forward(x, a_norm, *l1, *l2)
        np.testing.assert_allclose(np.asarray(out, np.float32),
                                   np.asarray(ref), atol=atol, rtol=rtol)

    k1, k2 = jax.random.split(key)

    # --- Test 1: small graph, f32 streams -> fused single-kernel path. -------
    n, c, e = 64, 32, 160
    x, edge_index, l1, l2 = make_problem(k1, n, c, e)
    params32 = prepare_res_hybrid_gcn_params(*l1, *l2, compute_dtype=jnp.float32)
    out = jax.block_until_ready(res_hybrid_block_forward(x, edge_index, params32))
    check(out, x, edge_index, l1, l2, atol=2e-3, rtol=2e-3)

    # --- Test 2: same graph, default bf16 streams; hoisted graph prep. ------
    params_bf16 = prepare_res_hybrid_gcn_params(*l1, *l2)          # bf16 default
    graph = prepare_res_hybrid_graph(edge_index, n, params_bf16)   # cacheable
    out = jax.block_until_ready(
        res_hybrid_block_forward(x, edge_index, params_bf16, graph=graph))
    check(out, x, edge_index, l1, l2, atol=5e-2, rtol=5e-2)

    # --- Test 3: force the K-tiled two-call path (large-graph code path). ---
    n, c, e = 300, 32, 900
    x, edge_index, l1, l2 = make_problem(k2, n, c, e)
    params_bf16 = prepare_res_hybrid_gcn_params(*l1, *l2)
    graph = prepare_res_hybrid_graph(edge_index, n, params_bf16,
                                     tile_cap=128, fuse_small=False)
    out = jax.block_until_ready(
        res_hybrid_block_forward(x, edge_index, params_bf16, graph=graph))
    check(out, x, edge_index, l1, l2, atol=5e-2, rtol=5e-2)

    print("KERNEL_OK")
</pallas_src>

<mosaic_0001>
module attributes {stable_mosaic.version = 11 : i64} {
  func.func @_fused_block_kernel(%arg0: i32, %arg1: memref<128x128xf32, #tpu.memory_space<vmem>>, %arg2: memref<128x128xf32, #tpu.memory_space<vmem>>, %arg3: memref<128x128xf32, #tpu.memory_space<vmem>>, %arg4: memref<1x128xf32, #tpu.memory_space<vmem>>, %arg5: memref<1x128xf32, #tpu.memory_space<vmem>>, %arg6: memref<128x128xf32, #tpu.memory_space<vmem>>, %arg7: memref<1x128xf32, #tpu.memory_space<vmem>>, %arg8: memref<1x128xf32, #tpu.memory_space<vmem>>, %arg9: memref<128x128xf32, #tpu.memory_space<vmem>>) attributes {dimension_semantics = [#tpu.dimension_semantics<arbitrary>], iteration_bounds = array<i64: 1>, scalar_prefetch = 0 : i64, scratch_operands = 0 : i64, tpu.core_type = #tpu.core_type<tc>, window_params = [{pipeline_mode = #tpu.pipeline_mode<synchronous>, transform_indices = @transform_0, window_bounds = array<i64: 128, 128>}, {pipeline_mode = #tpu.pipeline_mode<synchronous>, transform_indices = @transform_1, window_bounds = array<i64: 128, 128>}, {pipeline_mode = #tpu.pipeline_mode<synchronous>, transform_indices = @transform_2, window_bounds = array<i64: 128, 128>}, {pipeline_mode = #tpu.pipeline_mode<synchronous>, transform_indices = @transform_3, window_bounds = array<i64: 1, 128>}, {pipeline_mode = #tpu.pipeline_mode<synchronous>, transform_indices = @transform_4, window_bounds = array<i64: 1, 128>}, {pipeline_mode = #tpu.pipeline_mode<synchronous>, transform_indices = @transform_5, window_bounds = array<i64: 128, 128>}, {pipeline_mode = #tpu.pipeline_mode<synchronous>, transform_indices = @transform_6, window_bounds = array<i64: 1, 128>}, {pipeline_mode = #tpu.pipeline_mode<synchronous>, transform_indices = @transform_7, window_bounds = array<i64: 1, 128>}, {pipeline_mode = #tpu.pipeline_mode<synchronous>, transform_indices = @transform_8, window_bounds = array<i64: 128, 128>}]} {
    %c0 = arith.constant 0 : index
    %c0_0 = arith.constant 0 : index
    %0 = vector.load %arg1[%c0, %c0_0] : memref<128x128xf32, #tpu.memory_space<vmem>>, vector<128x128xf32>
    %c0_1 = arith.constant 0 : index
    %c0_2 = arith.constant 0 : index
    %1 = vector.load %arg2[%c0_1, %c0_2] : memref<128x128xf32, #tpu.memory_space<vmem>>, vector<128x128xf32>
    %cst = arith.constant dense<0.000000e+00> : vector<128x128xf32>
    %2 = tpu.matmul %0, %1, %cst {dimension_numbers = #tpu.dot_dimension_numbers<[1], [0], [0], [1], [0, 0, 1, 1], [], []>} : vector<128x128xf32>, vector<128x128xf32>, vector<128x128xf32> -> vector<128x128xf32>
    %c0_3 = arith.constant 0 : index
    %c0_4 = arith.constant 0 : index
    %3 = vector.load %arg3[%c0_3, %c0_4] : memref<128x128xf32, #tpu.memory_space<vmem>>, vector<128x128xf32>
    %cst_5 = arith.constant dense<0.000000e+00> : vector<128x128xf32>
    %4 = tpu.matmul %2, %3, %cst_5 {dimension_numbers = #tpu.dot_dimension_numbers<[1], [0], [0], [1], [0, 0, 1, 1], [], []>} : vector<128x128xf32>, vector<128x128xf32>, vector<128x128xf32> -> vector<128x128xf32>
    %c0_6 = arith.constant 0 : index
    %c0_7 = arith.constant 0 : index
    %5 = vector.load %arg4[%c0_6, %c0_7] : memref<1x128xf32, #tpu.memory_space<vmem>>, vector<1x128xf32>
    %6 = vector.broadcast %5 : vector<1x128xf32> to vector<128x128xf32>
    %7 = arith.mulf %4, %6 : vector<128x128xf32>
    %c0_8 = arith.constant 0 : index
    %c0_9 = arith.constant 0 : index
    %8 = vector.load %arg5[%c0_8, %c0_9] : memref<1x128xf32, #tpu.memory_space<vmem>>, vector<1x128xf32>
    %9 = vector.broadcast %8 : vector<1x128xf32> to vector<128x128xf32>
    %10 = arith.addf %7, %9 : vector<128x128xf32>
    %cst_10 = arith.constant 0.000000e+00 : f32
    %11 = vector.broadcast %cst_10 : f32 to vector<128x128xf32>
    %12 = arith.maximumf %10, %11 : vector<128x128xf32>
    %cst_11 = arith.constant dense<0.000000e+00> : vector<128x128xf32>
    %13 = tpu.matmul %0, %12, %cst_11 {dimension_numbers = #tpu.dot_dimension_numbers<[1], [0], [0], [1], [0, 0, 1, 1], [], []>} : vector<128x128xf32>, vector<128x128xf32>, vector<128x128xf32> -> vector<128x128xf32>
    %c0_12 = arith.constant 0 : index
    %c0_13 = arith.constant 0 : index
    %14 = vector.load %arg6[%c0_12, %c0_13] : memref<128x128xf32, #tpu.memory_space<vmem>>, vector<128x128xf32>
    %cst_14 = arith.constant dense<0.000000e+00> : vector<128x128xf32>
    %15 = tpu.matmul %13, %14, %cst_14 {dimension_numbers = #tpu.dot_dimension_numbers<[1], [0], [0], [1], [0, 0, 1, 1], [], []>} : vector<128x128xf32>, vector<128x128xf32>, vector<128x128xf32> -> vector<128x128xf32>
    %c0_15 = arith.constant 0 : index
    %c0_16 = arith.constant 0 : index
    %16 = vector.load %arg7[%c0_15, %c0_16] : memref<1x128xf32, #tpu.memory_space<vmem>>, vector<1x128xf32>
    %17 = vector.broadcast %16 : vector<1x128xf32> to vector<128x128xf32>
    %18 = arith.mulf %15, %17 : vector<128x128xf32>
    %c0_17 = arith.constant 0 : index
    %c0_18 = arith.constant 0 : index
    %19 = vector.load %arg8[%c0_17, %c0_18] : memref<1x128xf32, #tpu.memory_space<vmem>>, vector<1x128xf32>
    %20 = vector.broadcast %19 : vector<1x128xf32> to vector<128x128xf32>
    %21 = arith.addf %18, %20 : vector<128x128xf32>
    %cst_19 = arith.constant 0.000000e+00 : f32
    %22 = vector.broadcast %cst_19 : f32 to vector<128x128xf32>
    %23 = arith.maximumf %21, %22 : vector<128x128xf32>
    %24 = arith.addf %23, %1 : vector<128x128xf32>
    %cst_20 = arith.constant 0.707106769 : f32
    %25 = vector.broadcast %cst_20 : f32 to vector<128x128xf32>
    %26 = arith.mulf %24, %25 : vector<128x128xf32>
    %c0_21 = arith.constant 0 : index
    %c0_22 = arith.constant 0 : index
    %27 = vector.load %arg9[%c0_21, %c0_22] : memref<128x128xf32, #tpu.memory_space<vmem>>, vector<128x128xf32>
    tpu.vector_store %arg9[%c0_21, %c0_22], %26 {strides = array<i32>} : memref<128x128xf32, #tpu.memory_space<vmem>>, vector<128x128xf32>,
    return
  }
  func.func @transform_0(%arg0: i32) -> (i32, i32) {
    %c0_i32 = arith.constant 0 : i32
    %c0_i32_0 = arith.constant 0 : i32
    %c0_i32_1 = arith.constant 0 : i32
    return %c0_i32, %c0_i32_0 : i32, i32
  }
  func.func @transform_1(%arg0: i32) -> (i32, i32) {
    %c0_i32 = arith.constant 0 : i32
    %c0_i32_0 = arith.constant 0 : i32
    %c0_i32_1 = arith.constant 0 : i32
    return %c0_i32, %c0_i32_0 : i32, i32
  }
  func.func @transform_2(%arg0: i32) -> (i32, i32) {
    %c0_i32 = arith.constant 0 : i32
    %c0_i32_0 = arith.constant 0 : i32
    %c0_i32_1 = arith.constant 0 : i32
    return %c0_i32, %c0_i32_0 : i32, i32
  }
  func.func @transform_3(%arg0: i32) -> (i32, i32) {
    %c0_i32 = arith.constant 0 : i32
    %c0_i32_0 = arith.constant 0 : i32
    %c0_i32_1 = arith.constant 0 : i32
    return %c0_i32, %c0_i32_0 : i32, i32
  }
  func.func @transform_4(%arg0: i32) -> (i32, i32) {
    %c0_i32 = arith.constant 0 : i32
    %c0_i32_0 = arith.constant 0 : i32
    %c0_i32_1 = arith.constant 0 : i32
    return %c0_i32, %c0_i32_0 : i32, i32
  }
  func.func @transform_5(%arg0: i32) -> (i32, i32) {
    %c0_i32 = arith.constant 0 : i32
    %c0_i32_0 = arith.constant 0 : i32
    %c0_i32_1 = arith.constant 0 : i32
    return %c0_i32, %c0_i32_0 : i32, i32
  }
  func.func @transform_6(%arg0: i32) -> (i32, i32) {
    %c0_i32 = arith.constant 0 : i32
    %c0_i32_0 = arith.constant 0 : i32
    %c0_i32_1 = arith.constant 0 : i32
    return %c0_i32, %c0_i32_0 : i32, i32
  }
  func.func @transform_7(%arg0: i32) -> (i32, i32) {
    %c0_i32 = arith.constant 0 : i32
    %c0_i32_0 = arith.constant 0 : i32
    %c0_i32_1 = arith.constant 0 : i32
    return %c0_i32, %c0_i32_0 : i32, i32
  }
  func.func @transform_8(%arg0: i32) -> (i32, i32) {
    %c0_i32 = arith.constant 0 : i32
    %c0_i32_0 = arith.constant 0 : i32
    %c0_i32_1 = arith.constant 0 : i32
    return %c0_i32, %c0_i32_0 : i32, i32
  }
}

</mosaic_0001>

<llo_original>
// kernel: tpu_custom_call.1
$region0: #{tpu_custom_call.1}
  #allocation0 [shape = 'u32[]', space=smem, size = 0x4, offset = 0x4, fixed_abs, tag = 'smem constant byte address 0x4 - core index']
  #allocation1 [shape = 'u32[144,128]{1,0:T(1,128)}', space=vmem, size = 0x12000, scoped, tag = 'internal scratch']
  %s0 = inlined_call_operand.hbm [shape: f32[128,128], index: 0, kind: input, shape index: {}]
  %s1 = inlined_call_operand.hbm [shape: f32[128,128], index: 1, kind: input, shape index: {}]
  %s2 = inlined_call_operand.hbm [shape: f32[128,128], index: 2, kind: input, shape index: {}]
  %s3 = inlined_call_operand.vmem [shape: f32[1,128], index: 3, kind: input, shape index: {}]
  %s4 = inlined_call_operand.vmem [shape: f32[1,128], index: 4, kind: input, shape index: {}]
  %s5 = inlined_call_operand.hbm [shape: f32[128,128], index: 5, kind: input, shape index: {}]
  %s6 = inlined_call_operand.vmem [shape: f32[1,128], index: 6, kind: input, shape index: {}]
  %s7 = inlined_call_operand.vmem [shape: f32[1,128], index: 7, kind: input, shape index: {}]
  %s8 = inlined_call_operand.hbm [shape: f32[128,128], index: 8, kind: output, shape index: {}]
  %s9 = sld [smem:[#allocation0]]
  $region58: #{tpu_custom_call.1} parent=0
    _
  %s11 = ssub.s32 1, %s9
  %s12 = scalar_select 0, %s11, %s9
  $region1: #{tpu_custom_call.1} parent=0
    #allocation2 [shape = 'u8[65536]{0}', space=vmem, size = 0x10000, scoped, tag = 'input window, operand 0, single buffered']
    #allocation3 [shape = 's32[1]{0}', space=sflag, size = 0x4, scoped, tag = 'scoped memory for tpu_custom_call.1']
    #allocation4 [shape = 's32[1]{0}', space=sflag, size = 0x4, scoped, tag = 'scoped memory for tpu_custom_call.1']
    #allocation5 [shape = 'u8[65536]{0}', space=vmem, size = 0x10000, scoped, tag = 'input window, operand 1, single buffered']
    #allocation6 [shape = 's32[1]{0}', space=sflag, size = 0x4, scoped, tag = 'scoped memory for tpu_custom_call.1']
    #allocation7 [shape = 'u8[65536]{0}', space=vmem, size = 0x10000, scoped, tag = 'input window, operand 2, single buffered']
    #allocation8 [shape = 'u8[65536]{0}', space=vmem, size = 0x10000, scoped, tag = 'input window, operand 5, single buffered']
    #allocation9 [shape = 's32[1]{0}', space=sflag, size = 0x4, scoped, tag = 'scoped memory for tpu_custom_call.1']
    #allocation10 [shape = 'u8[65536]{0}', space=vmem, size = 0x10000, scoped, tag = 'output window, operand 0, single buffered']
    %13 = vsyncpa [#allocation3], 0
    %14 = vsyncpa [#allocation6], 0
    %15 = vsyncpa [#allocation9], 0
    %16 = vsyncpa [#allocation4], 0
    // Predicated region
    $region2: #{tpu_custom_call.1} parent=1 // pred_check
      _
    $region3: #{tpu_custom_call.1} parent=1 // pred_check_branch
      %18 = sbr.rel (0) target = $region5
    $region4: #{tpu_custom_call.1} parent=1 // pred_region
      %s20 = ssub.s32 2048, 2048
      %21 = vsyncadd [#allocation3], %s20
      %s22 = sshll.u32 [#allocation2], 4
      %s23 = int_to_ptr.vmem [resolvable:$true] %s22
      %28 = dma.hbm_to_vmem [thread:$0]  %s0, 2048, %s23, [#allocation3], 128, 128, 8
    $region5: #{tpu_custom_call.1} parent=1 // pred_fallthru
      _
    // Predicated region
    $region6: #{tpu_custom_call.1} parent=1 // pred_check
      _
    $region7: #{tpu_custom_call.1} parent=1 // pred_check_branch
      %30 = sbr.rel (0) target = $region9
    $region8: #{tpu_custom_call.1} parent=1 // pred_region
      %s32 = ssub.s32 2048, 2048
      %33 = vsyncadd [#allocation6], %s32
      %s34 = sshll.u32 [#allocation5], 4
      %s35 = int_to_ptr.vmem [resolvable:$true] %s34
      %40 = dma.hbm_to_vmem [thread:$0]  %s1, 2048, %s35, [#allocation6], 128, 128, 8
    $region9: #{tpu_custom_call.1} parent=1 // pred_fallthru
      _
    // Predicated region
    $region10: #{tpu_custom_call.1} parent=1 // pred_check
      _
    $region11: #{tpu_custom_call.1} parent=1 // pred_check_branch
      %42 = sbr.rel (0) target = $region13
    $region12: #{tpu_custom_call.1} parent=1 // pred_region
      %s44 = ssub.s32 2048, 2048
      %45 = vsyncadd [#allocation6], %s44
      %s46 = sshll.u32 [#allocation7], 4
      %s47 = int_to_ptr.vmem [resolvable:$true] %s46
      %52 = dma.hbm_to_vmem [thread:$0]  %s2, 2048, %s47, [#allocation6], 128, 128, 8
    $region13: #{tpu_custom_call.1} parent=1 // pred_fallthru
      _
    // Predicated region
    $region14: #{tpu_custom_call.1} parent=1 // pred_check
      _
    $region15: #{tpu_custom_call.1} parent=1 // pred_check_branch
      %54 = sbr.rel (0) target = $region17
    $region16: #{tpu_custom_call.1} parent=1 // pred_region
      _
    $region17: #{tpu_custom_call.1} parent=1 // pred_fallthru
      _
    // Predicated region
    $region18: #{tpu_custom_call.1} parent=1 // pred_check
      _
    $region19: #{tpu_custom_call.1} parent=1 // pred_check_branch
      %56 = sbr.rel (0) target = $region21
    $region20: #{tpu_custom_call.1} parent=1 // pred_region
      _
    $region21: #{tpu_custom_call.1} parent=1 // pred_fallthru
      _
    // Predicated region
    $region22: #{tpu_custom_call.1} parent=1 // pred_check
      _
    $region23: #{tpu_custom_call.1} parent=1 // pred_check_branch
      %58 = sbr.rel (0) target = $region25
    $region24: #{tpu_custom_call.1} parent=1 // pred_region
      %s60 = ssub.s32 2048, 2048
      %61 = vsyncadd [#allocation9], %s60
      %s62 = sshll.u32 [#allocation8], 4
      %s63 = int_to_ptr.vmem [resolvable:$true] %s62
      %68 = dma.hbm_to_vmem [thread:$0]  %s5, 2048, %s63, [#allocation9], 128, 128, 8
    $region25: #{tpu_custom_call.1} parent=1 // pred_fallthru
      _
    // Predicated region
    $region26: #{tpu_custom_call.1} parent=1 // pred_check
      _
    $region27: #{tpu_custom_call.1} parent=1 // pred_check_branch
      %70 = sbr.rel (0) target = $region29
    $region28: #{tpu_custom_call.1} parent=1 // pred_region
      _
    $region29: #{tpu_custom_call.1} parent=1 // pred_fallthru
      _
    // Predicated region
    $region30: #{tpu_custom_call.1} parent=1 // pred_check
      _
    $region31: #{tpu_custom_call.1} parent=1 // pred_check_branch
      %72 = sbr.rel (0) target = $region33
    $region32: #{tpu_custom_call.1} parent=1 // pred_region
      _
    $region33: #{tpu_custom_call.1} parent=1 // pred_fallthru
      _
    // Predicated region
    $region34: #{tpu_custom_call.1} parent=1 // pred_check
      _
    $region35: #{tpu_custom_call.1} parent=1 // pred_check_branch
      %74 = sbr.rel (0) target = $region37
    $region36: #{tpu_custom_call.1} parent=1 // pred_region
      %75 = dma.done [#allocation3], 2048
    $region37: #{tpu_custom_call.1} parent=1 // pred_fallthru
      _
    // Predicated region
    $region38: #{tpu_custom_call.1} parent=1 // pred_check
      _
    $region39: #{tpu_custom_call.1} parent=1 // pred_check_branch
      %77 = sbr.rel (0) target = $region41
    $region40: #{tpu_custom_call.1} parent=1 // pred_region
      %78 = dma.done [#allocation6], 2048
    $region41: #{tpu_custom_call.1} parent=1 // pred_fallthru
      _
    // Predicated region
    $region42: #{tpu_custom_call.1} parent=1 // pred_check
      _
    $region43: #{tpu_custom_call.1} parent=1 // pred_check_branch
      %80 = sbr.rel (0) target = $region45
    $region44: #{tpu_custom_call.1} parent=1 // pred_region
      %81 = dma.done [#allocation6], 2048
    $region45: #{tpu_custom_call.1} parent=1 // pred_fallthru
      _
    // Predicated region
    $region46: #{tpu_custom_call.1} parent=1 // pred_check
      _
    $region47: #{tpu_custom_call.1} parent=1 // pred_check_branch
      %83 = sbr.rel (0) target = $region49
    $region48: #{tpu_custom_call.1} parent=1 // pred_region
      %84 = dma.done [#allocation9], 2048
    $region49: #{tpu_custom_call.1} parent=1 // pred_fallthru
      _
    %v85 = vld [vmem:[#allocation2] sm:$0xff]
    %v86 = vld [vmem:[#allocation2 + $0x8] sm:$0xff]
    %v87 = vld [vmem:[#allocation2 + $0x10] sm:$0xff]
    %v88 = vld [vmem:[#allocation2 + $0x18] sm:$0xff]
    %v89 = vld [vmem:[#allocation2 + $0x20] sm:$0xff]
    %v90 = vld [vmem:[#allocation2 + $0x28] sm:$0xff]
    %v91 = vld [vmem:[#allocation2 + $0x30] sm:$0xff]
    %v92 = vld [vmem:[#allocation2 + $0x38] sm:$0xff]
    %v93 = vld [vmem:[#allocation2 + $0x40] sm:$0xff]
    %v94 = vld [vmem:[#allocation2 + $0x48] sm:$0xff]
    %v95 = vld [vmem:[#allocation2 + $0x50] sm:$0xff]
    %v96 = vld [vmem:[#allocation2 + $0x58] sm:$0xff]
    %v97 = vld [vmem:[#allocation2 + $0x60] sm:$0xff]
    %v98 = vld [vmem:[#allocation2 + $0x68] sm:$0xff]
    %v99 = vld [vmem:[#allocation2 + $0x70] sm:$0xff]
    %v100 = vld [vmem:[#allocation2 + $0x78] sm:$0xff]
    %v101 = vld [vmem:[#allocation5] sm:$0xff]
    %v102 = vld [vmem:[#allocation5 + $0x8] sm:$0xff]
    %v103 = vld [vmem:[#allocation5 + $0x10] sm:$0xff]
    %v104 = vld [vmem:[#allocation5 + $0x18] sm:$0xff]
    %v105 = vld [vmem:[#allocation5 + $0x20] sm:$0xff]
    %v106 = vld [vmem:[#allocation5 + $0x28] sm:$0xff]
    %v107 = vld [vmem:[#allocation5 + $0x30] sm:$0xff]
    %v108 = vld [vmem:[#allocation5 + $0x38] sm:$0xff]
    %v109 = vld [vmem:[#allocation5 + $0x40] sm:$0xff]
    %v110 = vld [vmem:[#allocation5 + $0x48] sm:$0xff]
    %v111 = vld [vmem:[#allocation5 + $0x50] sm:$0xff]
    %v112 = vld [vmem:[#allocation5 + $0x58] sm:$0xff]
    %v113 = vld [vmem:[#allocation5 + $0x60] sm:$0xff]
    %v114 = vld [vmem:[#allocation5 + $0x68] sm:$0xff]
    %v115 = vld [vmem:[#allocation5 + $0x70] sm:$0xff]
    %v116 = vld [vmem:[#allocation5 + $0x78] sm:$0xff]
    %117 = vmatprep.subr.mxu0 0.0
    %118 = vmatpush1.msra.mxu0 %v101
    %119 = vmatprep.subr.mxu0 0.0
    %120 = vmatpush1.msra.mxu0 %v102
    %121 = vmatprep.subr.mxu0 0.0
    %122 = vmatpush1.msra.mxu0 %v103
    %123 = vmatprep.subr.mxu0 0.0
    %124 = vmatpush1.msra.mxu0 %v104
    %125 = vmatprep.subr.mxu0 0.0
    %126 = vmatpush1.msra.mxu0 %v105
    %127 = vmatprep.subr.mxu0 0.0
    %128 = vmatpush1.msra.mxu0 %v106
    %129 = vmatprep.subr.mxu0 0.0
    %130 = vmatpush1.msra.mxu0 %v107
    %131 = vmatprep.subr.mxu0 0.0
    %132 = vmatpush1.msra.mxu0 %v108
    %133 = vmatprep.subr.mxu0 0.0
    %134 = vmatpush1.msra.mxu0 %v109
    %135 = vmatprep.subr.mxu0 0.0
    %136 = vmatpush1.msra.mxu0 %v110
    %137 = vmatprep.subr.mxu0 0.0
    %138 = vmatpush1.msra.mxu0 %v111
    %139 = vmatprep.subr.mxu0 0.0
    %140 = vmatpush1.msra.mxu0 %v112
    %141 = vmatprep.subr.mxu0 0.0
    %142 = vmatpush1.msra.mxu0 %v113
    %143 = vmatprep.subr.mxu0 0.0
    %144 = vmatpush1.msra.mxu0 %v114
    %145 = vmatprep.subr.mxu0 0.0
    %146 = vmatpush1.msra.mxu0 %v115
    %147 = vmatprep.subr.mxu0 0.0
    %148 = vmatpush1.msra.mxu0 %v116
    %149 = vmatprep.subr.mxu0 0.0
    %150 = vmatpush1.msra.mxu0 0.0
    %151 = vmatprep.subr.mxu0 0.0
    %152 = vmatpush1.msra.mxu0 0.0
    %153 = vmatprep.subr.mxu0 0.0
    %154 = vmatpush1.msra.mxu0 0.0
    %155 = vmatprep.subr.mxu0 0.0
    %156 = vmatpush1.msra.mxu0 0.0
    %157 = vmatprep.subr.mxu0 0.0
    %158 = vmatpush1.msra.mxu0 0.0
    %159 = vmatprep.subr.mxu0 0.0
    %160 = vmatpush1.msra.mxu0 0.0
    %161 = vmatprep.subr.mxu0 0.0
    %162 = vmatpush1.msra.mxu0 0.0
    %163 = vmatprep.subr.mxu0 0.0
    %164 = vmatpush1.msra.mxu0 0.0
    %165 = vmatprep.subr.mxu0 0.0
    %166 = vmatpush1.msra.mxu0 0.0
    %167 = vmatprep.subr.mxu0 0.0
    %168 = vmatpush1.msra.mxu0 0.0
    %169 = vmatprep.subr.mxu0 0.0
    %170 = vmatpush1.msra.mxu0 0.0
    %171 = vmatprep.subr.mxu0 0.0
    %172 = vmatpush1.msra.mxu0 0.0
    %173 = vmatprep.subr.mxu0 0.0
    %174 = vmatpush1.msra.mxu0 0.0
    %175 = vmatprep.subr.mxu0 0.0
    %176 = vmatpush1.msra.mxu0 0.0
    %177 = vmatprep.subr.mxu0 0.0
    %178 = vmatpush1.msra.mxu0 0.0
    %179 = vmatprep.subr.mxu0 0.0
    %180 = vmatpush1.msra.mxu0 0.0
    %181 = vmatprep.mubr.f32.mxu0 0.0
    %182 = vmatmul.mubr.f32.gmra.mrb[0].mxu0 %v85
    %v183 = vpop.f32.mrb[0].mxu0
    %v184 = vadd.f32 0.0, %v183
    %v185 = vpop.f32.mrb[0].mxu0
    %186 = vmatprep.mubr.f32.mxu0 0.0
    %187 = vmatmul.mubr.f32.gmra.mrb[0].mxu0 %v86
    %v188 = vpop.f32.mrb[0].mxu0
    %v189 = vadd.f32 0.0, %v188
    %v190 = vpop.f32.mrb[0].mxu0
    %191 = vmatprep.mubr.f32.mxu0 0.0
    %192 = vmatmul.mubr.f32.gmra.mrb[0].mxu0 %v87
    %v193 = vpop.f32.mrb[0].mxu0
    %v194 = vadd.f32 0.0, %v193
    %v195 = vpop.f32.mrb[0].mxu0
    %196 = vmatprep.mubr.f32.mxu0 0.0
    %197 = vmatmul.mubr.f32.gmra.mrb[0].mxu0 %v88
    %v198 = vpop.f32.mrb[0].mxu0
    %v199 = vadd.f32 0.0, %v198
    %v200 = vpop.f32.mrb[0].mxu0
    %201 = vmatprep.mubr.f32.mxu0 0.0
    %202 = vmatmul.mubr.f32.gmra.mrb[0].mxu0 %v89
    %v203 = vpop.f32.mrb[0].mxu0
    %v204 = vadd.f32 0.0, %v203
    %v205 = vpop.f32.mrb[0].mxu0
    %206 = vmatprep.mubr.f32.mxu0 0.0
    %207 = vmatmul.mubr.f32.gmra.mrb[0].mxu0 %v90
    %v208 = vpop.f32.mrb[0].mxu0
    %v209 = vadd.f32 0.0, %v208
    %v210 = vpop.f32.mrb[0].mxu0
    %211 = vmatprep.mubr.f32.mxu0 0.0
    %212 = vmatmul.mubr.f32.gmra.mrb[0].mxu0 %v91
    %v213 = vpop.f32.mrb[0].mxu0
    %v214 = vadd.f32 0.0, %v213
    %v215 = vpop.f32.mrb[0].mxu0
    %216 = vmatprep.mubr.f32.mxu0 0.0
    %217 = vmatmul.mubr.f32.gmra.mrb[0].mxu0 %v92
    %v218 = vpop.f32.mrb[0].mxu0
    %v219 = vadd.f32 0.0, %v218
    %v220 = vpop.f32.mrb[0].mxu0
    %221 = vmatprep.mubr.f32.mxu0 0.0
    %222 = vmatmul.mubr.f32.gmra.mrb[0].mxu0 %v93
    %v223 = vpop.f32.mrb[0].mxu0
    %v224 = vadd.f32 0.0, %v223
    %v225 = vpop.f32.mrb[0].mxu0
    %226 = vmatprep.mubr.f32.mxu0 0.0
    %227 = vmatmul.mubr.f32.gmra.mrb[0].mxu0 %v94
    %v228 = vpop.f32.mrb[0].mxu0
    %v229 = vadd.f32 0.0, %v228
    %v230 = vpop.f32.mrb[0].mxu0
    %231 = vmatprep.mubr.f32.mxu0 0.0
    %232 = vmatmul.mubr.f32.gmra.mrb[0].mxu0 %v95
    %v233 = vpop.f32.mrb[0].mxu0
    %v234 = vadd.f32 0.0, %v233
    %v235 = vpop.f32.mrb[0].mxu0
    %236 = vmatprep.mubr.f32.mxu0 0.0
    %237 = vmatmul.mubr.f32.gmra.mrb[0].mxu0 %v96
    %v238 = vpop.f32.mrb[0].mxu0
    %v239 = vadd.f32 0.0, %v238
    %v240 = vpop.f32.mrb[0].mxu0
    %241 = vmatprep.mubr.f32.mxu0 0.0
    %242 = vmatmul.mubr.f32.gmra.mrb[0].mxu0 %v97
    %v243 = vpop.f32.mrb[0].mxu0
    %v244 = vadd.f32 0.0, %v243
    %v245 = vpop.f32.mrb[0].mxu0
    %246 = vmatprep.mubr.f32.mxu0 0.0
    %247 = vmatmul.mubr.f32.gmra.mrb[0].mxu0 %v98
    %v248 = vpop.f32.mrb[0].mxu0
    %v249 = vadd.f32 0.0, %v248
    %v250 = vpop.f32.mrb[0].mxu0
    %251 = vmatprep.mubr.f32.mxu0 0.0
    %252 = vmatmul.mubr.f32.gmra.mrb[0].mxu0 %v99
    %v253 = vpop.f32.mrb[0].mxu0
    %v254 = vadd.f32 0.0, %v253
    %v255 = vpop.f32.mrb[0].mxu0
    %256 = vmatprep.mubr.f32.mxu0 0.0
    %257 = vmatmul.mubr.f32.gmra.mrb[0].mxu0 %v100
    %v258 = vpop.f32.mrb[0].mxu0
    %v259 = vadd.f32 0.0, %v258
    %v260 = vpop.f32.mrb[0].mxu0
    %261 = vdwg.mxu0
    %v262 = vld [vmem:[#allocation7] sm:$0xff]
    %v263 = vld [vmem:[#allocation7 + $0x8] sm:$0xff]
    %v264 = vld [vmem:[#allocation7 + $0x10] sm:$0xff]
    %v265 = vld [vmem:[#allocation7 + $0x18] sm:$0xff]
    %v266 = vld [vmem:[#allocation7 + $0x20] sm:$0xff]
    %v267 = vld [vmem:[#allocation7 + $0x28] sm:$0xff]
    %v268 = vld [vmem:[#allocation7 + $0x30] sm:$0xff]
    %v269 = vld [vmem:[#allocation7 + $0x38] sm:$0xff]
    %v270 = vld [vmem:[#allocation7 + $0x40] sm:$0xff]
    %v271 = vld [vmem:[#allocation7 + $0x48] sm:$0xff]
    %v272 = vld [vmem:[#allocation7 + $0x50] sm:$0xff]
    %v273 = vld [vmem:[#allocation7 + $0x58] sm:$0xff]
    %v274 = vld [vmem:[#allocation7 + $0x60] sm:$0xff]
    %v275 = vld [vmem:[#allocation7 + $0x68] sm:$0xff]
    %v276 = vld [vmem:[#allocation7 + $0x70] sm:$0xff]
    %v277 = vld [vmem:[#allocation7 + $0x78] sm:$0xff]
    %278 = vmatprep.subr.mxu0 0.0
    %279 = vmatpush1.msra.mxu0 %v262
    %280 = vmatprep.subr.mxu0 0.0
    %281 = vmatpush1.msra.mxu0 %v263
    %282 = vmatprep.subr.mxu0 0.0
    %283 = vmatpush1.msra.mxu0 %v264
    %284 = vmatprep.subr.mxu0 0.0
    %285 = vmatpush1.msra.mxu0 %v265
    %286 = vmatprep.subr.mxu0 0.0
    %287 = vmatpush1.msra.mxu0 %v266
    %288 = vmatprep.subr.mxu0 0.0
    %289 = vmatpush1.msra.mxu0 %v267
    %290 = vmatprep.subr.mxu0 0.0
    %291 = vmatpush1.msra.mxu0 %v268
    %292 = vmatprep.subr.mxu0 0.0
    %293 = vmatpush1.msra.mxu0 %v269
    %294 = vmatprep.subr.mxu0 0.0
    %295 = vmatpush1.msra.mxu0 %v270
    %296 = vmatprep.subr.mxu0 0.0
    %297 = vmatpush1.msra.mxu0 %v271
    %298 = vmatprep.subr.mxu0 0.0
    %299 = vmatpush1.msra.mxu0 %v272
    %300 = vmatprep.subr.mxu0 0.0
    %301 = vmatpush1.msra.mxu0 %v273
    %302 = vmatprep.subr.mxu0 0.0
    %303 = vmatpush1.msra.mxu0 %v274
    %304 = vmatprep.subr.mxu0 0.0
    %305 = vmatpush1.msra.mxu0 %v275
    %306 = vmatprep.subr.mxu0 0.0
    %307 = vmatpush1.msra.mxu0 %v276
    %308 = vmatprep.subr.mxu0 0.0
    %309 = vmatpush1.msra.mxu0 %v277
    %310 = vmatprep.subr.mxu0 0.0
    %311 = vmatpush1.msra.mxu0 0.0
    %312 = vmatprep.subr.mxu0 0.0
    %313 = vmatpush1.msra.mxu0 0.0
    %314 = vmatprep.subr.mxu0 0.0
    %315 = vmatpush1.msra.mxu0 0.0
    %316 = vmatprep.subr.mxu0 0.0
    %317 = vmatpush1.msra.mxu0 0.0
    %318 = vmatprep.subr.mxu0 0.0
    %319 = vmatpush1.msra.mxu0 0.0
    %320 = vmatprep.subr.mxu0 0.0
    %321 = vmatpush1.msra.mxu0 0.0
    %322 = vmatprep.subr.mxu0 0.0
    %323 = vmatpush1.msra.mxu0 0.0
    %324 = vmatprep.subr.mxu0 0.0
    %325 = vmatpush1.msra.mxu0 0.0
    %326 = vmatprep.subr.mxu0 0.0
    %327 = vmatpush1.msra.mxu0 0.0
    %328 = vmatprep.subr.mxu0 0.0
    %329 = vmatpush1.msra.mxu0 0.0
    %330 = vmatprep.subr.mxu0 0.0
    %331 = vmatpush1.msra.mxu0 0.0
    %332 = vmatprep.subr.mxu0 0.0
    %333 = vmatpush1.msra.mxu0 0.0
    %334 = vmatprep.subr.mxu0 0.0
    %335 = vmatpush1.msra.mxu0 0.0
    %336 = vmatprep.subr.mxu0 0.0
    %337 = vmatpush1.msra.mxu0 0.0
    %338 = vmatprep.subr.mxu0 0.0
    %339 = vmatpush1.msra.mxu0 0.0
    %340 = vmatprep.subr.mxu0 0.0
    %341 = vmatpush1.msra.mxu0 0.0
    %342 = vmatprep.mubr.f32.mxu0 0.0
    %343 = vmatmul.mubr.f32.gmra.mrb[0].mxu0 %v184
    %v344 = vpop.f32.mrb[0].mxu0
    %v345 = vadd.f32 0.0, %v344
    %v346 = vpop.f32.mrb[0].mxu0
    %347 = vmatprep.mubr.f32.mxu0 0.0
    %348 = vmatmul.mubr.f32.gmra.mrb[0].mxu0 %v189
    %v349 = vpop.f32.mrb[0].mxu0
    %v350 = vadd.f32 0.0, %v349
    %v351 = vpop.f32.mrb[0].mxu0
    %352 = vmatprep.mubr.f32.mxu0 0.0
    %353 = vmatmul.mubr.f32.gmra.mrb[0].mxu0 %v194
    %v354 = vpop.f32.mrb[0].mxu0
    %v355 = vadd.f32 0.0, %v354
    %v356 = vpop.f32.mrb[0].mxu0
    %357 = vmatprep.mubr.f32.mxu0 0.0
    %358 = vmatmul.mubr.f32.gmra.mrb[0].mxu0 %v199
    %v359 = vpop.f32.mrb[0].mxu0
    %v360 = vadd.f32 0.0, %v359
    %v361 = vpop.f32.mrb[0].mxu0
    %362 = vmatprep.mubr.f32.mxu0 0.0
    %363 = vmatmul.mubr.f32.gmra.mrb[0].mxu0 %v204
    %v364 = vpop.f32.mrb[0].mxu0
    %v365 = vadd.f32 0.0, %v364
    %v366 = vpop.f32.mrb[0].mxu0
    %367 = vmatprep.mubr.f32.mxu0 0.0
    %368 = vmatmul.mubr.f32.gmra.mrb[0].mxu0 %v209
    %v369 = vpop.f32.mrb[0].mxu0
    %v370 = vadd.f32 0.0, %v369
    %v371 = vpop.f32.mrb[0].mxu0
    %372 = vmatprep.mubr.f32.mxu0 0.0
    %373 = vmatmul.mubr.f32.gmra.mrb[0].mxu0 %v214
    %v374 = vpop.f32.mrb[0].mxu0
    %v375 = vadd.f32 0.0, %v374
    %v376 = vpop.f32.mrb[0].mxu0
    %377 = vmatprep.mubr.f32.mxu0 0.0
    %378 = vmatmul.mubr.f32.gmra.mrb[0].mxu0 %v219
    %v379 = vpop.f32.mrb[0].mxu0
    %v380 = vadd.f32 0.0, %v379
    %v381 = vpop.f32.mrb[0].mxu0
    %382 = vmatprep.mubr.f32.mxu0 0.0
    %383 = vmatmul.mubr.f32.gmra.mrb[0].mxu0 %v224
    %v384 = vpop.f32.mrb[0].mxu0
    %v385 = vadd.f32 0.0, %v384
    %v386 = vpop.f32.mrb[0].mxu0
    %387 = vmatprep.mubr.f32.mxu0 0.0
    %388 = vmatmul.mubr.f32.gmra.mrb[0].mxu0 %v229
    %v389 = vpop.f32.mrb[0].mxu0
    %v390 = vadd.f32 0.0, %v389
    %v391 = vpop.f32.mrb[0].mxu0
    %392 = vmatprep.mubr.f32.mxu0 0.0
    %393 = vmatmul.mubr.f32.gmra.mrb[0].mxu0 %v234
    %v394 = vpop.f32.mrb[0].mxu0
    %v395 = vadd.f32 0.0, %v394
    %v396 = vpop.f32.mrb[0].mxu0
    %397 = vmatprep.mubr.f32.mxu0 0.0
    %398 = vmatmul.mubr.f32.gmra.mrb[0].mxu0 %v239
    %v399 = vpop.f32.mrb[0].mxu0
    %v400 = vadd.f32 0.0, %v399
    %v401 = vpop.f32.mrb[0].mxu0
    %402 = vmatprep.mubr.f32.mxu0 0.0
    %403 = vmatmul.mubr.f32.gmra.mrb[0].mxu0 %v244
    %v404 = vpop.f32.mrb[0].mxu0
    %v405 = vadd.f32 0.0, %v404
    %v406 = vpop.f32.mrb[0].mxu0
    %407 = vmatprep.mubr.f32.mxu0 0.0
    %408 = vmatmul.mubr.f32.gmra.mrb[0].mxu0 %v249
    %v409 = vpop.f32.mrb[0].mxu0
    %v410 = vadd.f32 0.0, %v409
    %v411 = vpop.f32.mrb[0].mxu0
    %412 = vmatprep.mubr.f32.mxu0 0.0
    %413 = vmatmul.mubr.f32.gmra.mrb[0].mxu0 %v254
    %v414 = vpop.f32.mrb[0].mxu0
    %v415 = vadd.f32 0.0, %v414
    %v416 = vpop.f32.mrb[0].mxu0
    %417 = vmatprep.mubr.f32.mxu0 0.0
    %418 = vmatmul.mubr.f32.gmra.mrb[0].mxu0 %v259
    %v419 = vpop.f32.mrb[0].mxu0
    %v420 = vadd.f32 0.0, %v419
    %v421 = vpop.f32.mrb[0].mxu0
    %422 = vdwg.mxu0
    %v423 = vld [vmem:[%s3] sm:$0x1]
    %v425 = vlaneseq
    %v426 = vshrl.u32 %v425, 7
    %v427 = vsub.s32 0, %v426
    %v428 = vrot.slane %v423, %v427
    %v430 = vmul.f32 %v345, %v428
    %v431 = vmul.f32 %v350, %v428
    %v432 = vmul.f32 %v355, %v428
    %v433 = vmul.f32 %v360, %v428
    %v434 = vmul.f32 %v365, %v428
    %v435 = vmul.f32 %v370, %v428
    %v436 = vmul.f32 %v375, %v428
    %v437 = vmul.f32 %v380, %v428
    %v438 = vmul.f32 %v385, %v428
    %v439 = vmul.f32 %v390, %v428
    %v440 = vmul.f32 %v395, %v428
    %v441 = vmul.f32 %v400, %v428
    %v442 = vmul.f32 %v405, %v428
    %v443 = vmul.f32 %v410, %v428
    %v444 = vmul.f32 %v415, %v428
    %v445 = vmul.f32 %v420, %v428
    %v446 = vld [vmem:[%s4] sm:$0x1]
    %v448 = vlaneseq
    %v449 = vshrl.u32 %v448, 7
    %v450 = vsub.s32 0, %v449
    %v451 = vrot.slane %v446, %v450
    %v453 = vadd.f32 %v430, %v451
    %v454 = vadd.f32 %v431, %v451
    %v455 = vadd.f32 %v432, %v451
    %v456 = vadd.f32 %v433, %v451
    %v457 = vadd.f32 %v434, %v451
    %v458 = vadd.f32 %v435, %v451
    %v459 = vadd.f32 %v436, %v451
    %v460 = vadd.f32 %v437, %v451
    %v461 = vadd.f32 %v438, %v451
    %v462 = vadd.f32 %v439, %v451
    %v463 = vadd.f32 %v440, %v451
    %v464 = vadd.f32 %v441, %v451
    %v465 = vadd.f32 %v442, %v451
    %v466 = vadd.f32 %v443, %v451
    %v467 = vadd.f32 %v444, %v451
    %v468 = vadd.f32 %v445, %v451
    %v469 = vmax.f32 %v453, 0.0
    %v470 = vmax.f32 %v454, 0.0
    %v471 = vmax.f32 %v455, 0.0
    %v472 = vmax.f32 %v456, 0.0
    %v473 = vmax.f32 %v457, 0.0
    %v474 = vmax.f32 %v458, 0.0
    %v475 = vmax.f32 %v459, 0.0
    %v476 = vmax.f32 %v460, 0.0
    %v477 = vmax.f32 %v461, 0.0
    %v478 = vmax.f32 %v462, 0.0
    %v479 = vmax.f32 %v463, 0.0
    %v480 = vmax.f32 %v464, 0.0
    %v481 = vmax.f32 %v465, 0.0
    %v482 = vmax.f32 %v466, 0.0
    %v483 = vmax.f32 %v467, 0.0
    %v484 = vmax.f32 %v468, 0.0
    %485 = vmatprep.subr.mxu0 0.0
    %486 = vmatpush1.msra.mxu0 %v469
    %487 = vmatprep.subr.mxu0 0.0
    %488 = vmatpush1.msra.mxu0 %v470
    %489 = vmatprep.subr.mxu0 0.0
    %490 = vmatpush1.msra.mxu0 %v471
    %491 = vmatprep.subr.mxu0 0.0
    %492 = vmatpush1.msra.mxu0 %v472
    %493 = vmatprep.subr.mxu0 0.0
    %494 = vmatpush1.msra.mxu0 %v473
    %495 = vmatprep.subr.mxu0 0.0
    %496 = vmatpush1.msra.mxu0 %v474
    %497 = vmatprep.subr.mxu0 0.0
    %498 = vmatpush1.msra.mxu0 %v475
    %499 = vmatprep.subr.mxu0 0.0
    %500 = vmatpush1.msra.mxu0 %v476
    %501 = vmatprep.subr.mxu0 0.0
    %502 = vmatpush1.msra.mxu0 %v477
    %503 = vmatprep.subr.mxu0 0.0
    %504 = vmatpush1.msra.mxu0 %v478
    %505 = vmatprep.subr.mxu0 0.0
    %506 = vmatpush1.msra.mxu0 %v479
    %507 = vmatprep.subr.mxu0 0.0
    %508 = vmatpush1.msra.mxu0 %v480
    %509 = vmatprep.subr.mxu0 0.0
    %510 = vmatpush1.msra.mxu0 %v481
    %511 = vmatprep.subr.mxu0 0.0
    %512 = vmatpush1.msra.mxu0 %v482
    %513 = vmatprep.subr.mxu0 0.0
    %514 = vmatpush1.msra.mxu0 %v483
    %515 = vmatprep.subr.mxu0 0.0
    %516 = vmatpush1.msra.mxu0 %v484
    %517 = vmatprep.subr.mxu0 0.0
    %518 = vmatpush1.msra.mxu0 0.0
    %519 = vmatprep.subr.mxu0 0.0
    %520 = vmatpush1.msra.mxu0 0.0
    %521 = vmatprep.subr.mxu0 0.0
    %522 = vmatpush1.msra.mxu0 0.0
    %523 = vmatprep.subr.mxu0 0.0
    %524 = vmatpush1.msra.mxu0 0.0
    %525 = vmatprep.subr.mxu0 0.0
    %526 = vmatpush1.msra.mxu0 0.0
    %527 = vmatprep.subr.mxu0 0.0
    %528 = vmatpush1.msra.mxu0 0.0
    %529 = vmatprep.subr.mxu0 0.0
    %530 = vmatpush1.msra.mxu0 0.0
    %531 = vmatprep.subr.mxu0 0.0
    %532 = vmatpush1.msra.mxu0 0.0
    %533 = vmatprep.subr.mxu0 0.0
    %534 = vmatpush1.msra.mxu0 0.0
    %535 = vmatprep.subr.mxu0 0.0
    %536 = vmatpush1.msra.mxu0 0.0
    %537 = vmatprep.subr.mxu0 0.0
    %538 = vmatpush1.msra.mxu0 0.0
    %539 = vmatprep.subr.mxu0 0.0
    %540 = vmatpush1.msra.mxu0 0.0
    %541 = vmatprep.subr.mxu0 0.0
    %542 = vmatpush1.msra.mxu0 0.0
    %543 = vmatprep.subr.mxu0 0.0
    %544 = vmatpush1.msra.mxu0 0.0
    %545 = vmatprep.subr.mxu0 0.0
    %546 = vmatpush1.msra.mxu0 0.0
    %547 = vmatprep.subr.mxu0 0.0
    %548 = vmatpush1.msra.mxu0 0.0
    %549 = vmatprep.mubr.f32.mxu0 0.0
    %550 = vmatmul.mubr.f32.gmra.mrb[0].mxu0 %v85
    %v551 = vpop.f32.mrb[0].mxu0
    %v552 = vadd.f32 0.0, %v551
    %v553 = vpop.f32.mrb[0].mxu0
    %554 = vmatprep.mubr.f32.mxu0 0.0
    %555 = vmatmul.mubr.f32.gmra.mrb[0].mxu0 %v86
    %v556 = vpop.f32.mrb[0].mxu0
    %v557 = vadd.f32 0.0, %v556
    %v558 = vpop.f32.mrb[0].mxu0
    %559 = vmatprep.mubr.f32.mxu0 0.0
    %560 = vmatmul.mubr.f32.gmra.mrb[0].mxu0 %v87
    %v561 = vpop.f32.mrb[0].mxu0
    %v562 = vadd.f32 0.0, %v561
    %v563 = vpop.f32.mrb[0].mxu0
    %564 = vmatprep.mubr.f32.mxu0 0.0
    %565 = vmatmul.mubr.f32.gmra.mrb[0].mxu0 %v88
    %v566 = vpop.f32.mrb[0].mxu0
    %v567 = vadd.f32 0.0, %v566
    %v568 = vpop.f32.mrb[0].mxu0
    %569 = vmatprep.mubr.f32.mxu0 0.0
    %570 = vmatmul.mubr.f32.gmra.mrb[0].mxu0 %v89
    %v571 = vpop.f32.mrb[0].mxu0
    %v572 = vadd.f32 0.0, %v571
    %v573 = vpop.f32.mrb[0].mxu0
    %574 = vmatprep.mubr.f32.mxu0 0.0
    %575 = vmatmul.mubr.f32.gmra.mrb[0].mxu0 %v90
    %v576 = vpop.f32.mrb[0].mxu0
    %v577 = vadd.f32 0.0, %v576
    %v578 = vpop.f32.mrb[0].mxu0
    %579 = vmatprep.mubr.f32.mxu0 0.0
    %580 = vmatmul.mubr.f32.gmra.mrb[0].mxu0 %v91
    %v581 = vpop.f32.mrb[0].mxu0
    %v582 = vadd.f32 0.0, %v581
    %v583 = vpop.f32.mrb[0].mxu0
    %584 = vmatprep.mubr.f32.mxu0 0.0
    %585 = vmatmul.mubr.f32.gmra.mrb[0].mxu0 %v92
    %v586 = vpop.f32.mrb[0].mxu0
    %v587 = vadd.f32 0.0, %v586
    %v588 = vpop.f32.mrb[0].mxu0
    %589 = vmatprep.mubr.f32.mxu0 0.0
    %590 = vmatmul.mubr.f32.gmra.mrb[0].mxu0 %v93
    %v591 = vpop.f32.mrb[0].mxu0
    %v592 = vadd.f32 0.0, %v591
    %v593 = vpop.f32.mrb[0].mxu0
    %594 = vmatprep.mubr.f32.mxu0 0.0
    %595 = vmatmul.mubr.f32.gmra.mrb[0].mxu0 %v94
    %v596 = vpop.f32.mrb[0].mxu0
    %v597 = vadd.f32 0.0, %v596
    %v598 = vpop.f32.mrb[0].mxu0
    %599 = vmatprep.mubr.f32.mxu0 0.0
    %600 = vmatmul.mubr.f32.gmra.mrb[0].mxu0 %v95
    %v601 = vpop.f32.mrb[0].mxu0
    %v602 = vadd.f32 0.0, %v601
    %v603 = vpop.f32.mrb[0].mxu0
    %604 = vmatprep.mubr.f32.mxu0 0.0
    %605 = vmatmul.mubr.f32.gmra.mrb[0].mxu0 %v96
    %v606 = vpop.f32.mrb[0].mxu0
    %v607 = vadd.f32 0.0, %v606
    %v608 = vpop.f32.mrb[0].mxu0
    %609 = vmatprep.mubr.f32.mxu0 0.0
    %610 = vmatmul.mubr.f32.gmra.mrb[0].mxu0 %v97
    %v611 = vpop.f32.mrb[0].mxu0
    %v612 = vadd.f32 0.0, %v611
    %v613 = vpop.f32.mrb[0].mxu0
    %614 = vmatprep.mubr.f32.mxu0 0.0
    %615 = vmatmul.mubr.f32.gmra.mrb[0].mxu0 %v98
    %v616 = vpop.f32.mrb[0].mxu0
    %v617 = vadd.f32 0.0, %v616
    %v618 = vpop.f32.mrb[0].mxu0
    %619 = vmatprep.mubr.f32.mxu0 0.0
    %620 = vmatmul.mubr.f32.gmra.mrb[0].mxu0 %v99
    %v621 = vpop.f32.mrb[0].mxu0
    %v622 = vadd.f32 0.0, %v621
    %v623 = vpop.f32.mrb[0].mxu0
    %624 = vmatprep.mubr.f32.mxu0 0.0
    %625 = vmatmul.mubr.f32.gmra.mrb[0].mxu0 %v100
    %v626 = vpop.f32.mrb[0].mxu0
    %v627 = vadd.f32 0.0, %v626
    %v628 = vpop.f32.mrb[0].mxu0
    %629 = vdwg.mxu0
    %v630 = vld [vmem:[#allocation8] sm:$0xff]
    %v631 = vld [vmem:[#allocation8 + $0x8] sm:$0xff]
    %v632 = vld [vmem:[#allocation8 + $0x10] sm:$0xff]
    %v633 = vld [vmem:[#allocation8 + $0x18] sm:$0xff]
    %v634 = vld [vmem:[#allocation8 + $0x20] sm:$0xff]
    %v635 = vld [vmem:[#allocation8 + $0x28] sm:$0xff]
    %v636 = vld [vmem:[#allocation8 + $0x30] sm:$0xff]
    %v637 = vld [vmem:[#allocation8 + $0x38] sm:$0xff]
    %v638 = vld [vmem:[#allocation8 + $0x40] sm:$0xff]
    %v639 = vld [vmem:[#allocation8 + $0x48] sm:$0xff]
    %v640 = vld [vmem:[#allocation8 + $0x50] sm:$0xff]
    %v641 = vld [vmem:[#allocation8 + $0x58] sm:$0xff]
    %v642 = vld [vmem:[#allocation8 + $0x60] sm:$0xff]
    %v643 = vld [vmem:[#allocation8 + $0x68] sm:$0xff]
    %v644 = vld [vmem:[#allocation8 + $0x70] sm:$0xff]
    %v645 = vld [vmem:[#allocation8 + $0x78] sm:$0xff]
    %646 = vmatprep.subr.mxu0 0.0
    %647 = vmatpush1.msra.mxu0 %v630
    %648 = vmatprep.subr.mxu0 0.0
    %649 = vmatpush1.msra.mxu0 %v631
    %650 = vmatprep.subr.mxu0 0.0
    %651 = vmatpush1.msra.mxu0 %v632
    %652 = vmatprep.subr.mxu0 0.0
    %653 = vmatpush1.msra.mxu0 %v633
    %654 = vmatprep.subr.mxu0 0.0
    %655 = vmatpush1.msra.mxu0 %v634
    %656 = vmatprep.subr.mxu0 0.0
    %657 = vmatpush1.msra.mxu0 %v635
    %658 = vmatprep.subr.mxu0 0.0
    %659 = vmatpush1.msra.mxu0 %v636
    %660 = vmatprep.subr.mxu0 0.0
    %661 = vmatpush1.msra.mxu0 %v637
    %662 = vmatprep.subr.mxu0 0.0
    %663 = vmatpush1.msra.mxu0 %v638
    %664 = vmatprep.subr.mxu0 0.0
    %665 = vmatpush1.msra.mxu0 %v639
    %666 = vmatprep.subr.mxu0 0.0
    %667 = vmatpush1.msra.mxu0 %v640
    %668 = vmatprep.subr.mxu0 0.0
    %669 = vmatpush1.msra.mxu0 %v641
    %670 = vmatprep.subr.mxu0 0.0
    %671 = vmatpush1.msra.mxu0 %v642
    %672 = vmatprep.subr.mxu0 0.0
    %673 = vmatpush1.msra.mxu0 %v643
    %674 = vmatprep.subr.mxu0 0.0
    %675 = vmatpush1.msra.mxu0 %v644
    %676 = vmatprep.subr.mxu0 0.0
    %677 = vmatpush1.msra.mxu0 %v645
    %678 = vmatprep.subr.mxu0 0.0
    %679 = vmatpush1.msra.mxu0 0.0
    %680 = vmatprep.subr.mxu0 0.0
    %681 = vmatpush1.msra.mxu0 0.0
    %682 = vmatprep.subr.mxu0 0.0
    %683 = vmatpush1.msra.mxu0 0.0
    %684 = vmatprep.subr.mxu0 0.0
    %685 = vmatpush1.msra.mxu0 0.0
    %686 = vmatprep.subr.mxu0 0.0
    %687 = vmatpush1.msra.mxu0 0.0
    %688 = vmatprep.subr.mxu0 0.0
    %689 = vmatpush1.msra.mxu0 0.0
    %690 = vmatprep.subr.mxu0 0.0
    %691 = vmatpush1.msra.mxu0 0.0
    %692 = vmatprep.subr.mxu0 0.0
    %693 = vmatpush1.msra.mxu0 0.0
    %694 = vmatprep.subr.mxu0 0.0
    %695 = vmatpush1.msra.mxu0 0.0
    %696 = vmatprep.subr.mxu0 0.0
    %697 = vmatpush1.msra.mxu0 0.0
    %698 = vmatprep.subr.mxu0 0.0
    %699 = vmatpush1.msra.mxu0 0.0
    %700 = vmatprep.subr.mxu0 0.0
    %701 = vmatpush1.msra.mxu0 0.0
    %702 = vmatprep.subr.mxu0 0.0
    %703 = vmatpush1.msra.mxu0 0.0
    %704 = vmatprep.subr.mxu0 0.0
    %705 = vmatpush1.msra.mxu0 0.0
    %706 = vmatprep.subr.mxu0 0.0
    %707 = vmatpush1.msra.mxu0 0.0
    %708 = vmatprep.subr.mxu0 0.0
    %709 = vmatpush1.msra.mxu0 0.0
    %710 = vmatprep.mubr.f32.mxu0 0.0
    %711 = vmatmul.mubr.f32.gmra.mrb[0].mxu0 %v552
    %v712 = vpop.f32.mrb[0].mxu0
    %v713 = vadd.f32 0.0, %v712
    %v714 = vpop.f32.mrb[0].mxu0
    %715 = vmatprep.mubr.f32.mxu0 0.0
    %716 = vmatmul.mubr.f32.gmra.mrb[0].mxu0 %v557
    %v717 = vpop.f32.mrb[0].mxu0
    %v718 = vadd.f32 0.0, %v717
    %v719 = vpop.f32.mrb[0].mxu0
    %720 = vmatprep.mubr.f32.mxu0 0.0
    %721 = vmatmul.mubr.f32.gmra.mrb[0].mxu0 %v562
    %v722 = vpop.f32.mrb[0].mxu0
    %v723 = vadd.f32 0.0, %v722
    %v724 = vpop.f32.mrb[0].mxu0
    %725 = vmatprep.mubr.f32.mxu0 0.0
    %726 = vmatmul.mubr.f32.gmra.mrb[0].mxu0 %v567
    %v727 = vpop.f32.mrb[0].mxu0
    %v728 = vadd.f32 0.0, %v727
    %v729 = vpop.f32.mrb[0].mxu0
    %730 = vmatprep.mubr.f32.mxu0 0.0
    %731 = vmatmul.mubr.f32.gmra.mrb[0].mxu0 %v572
    %v732 = vpop.f32.mrb[0].mxu0
    %v733 = vadd.f32 0.0, %v732
    %v734 = vpop.f32.mrb[0].mxu0
    %735 = vmatprep.mubr.f32.mxu0 0.0
    %736 = vmatmul.mubr.f32.gmra.mrb[0].mxu0 %v577
    %v737 = vpop.f32.mrb[0].mxu0
    %v738 = vadd.f32 0.0, %v737
    %v739 = vpop.f32.mrb[0].mxu0
    %740 = vmatprep.mubr.f32.mxu0 0.0
    %741 = vmatmul.mubr.f32.gmra.mrb[0].mxu0 %v582
    %v742 = vpop.f32.mrb[0].mxu0
    %v743 = vadd.f32 0.0, %v742
    %v744 = vpop.f32.mrb[0].mxu0
    %745 = vmatprep.mubr.f32.mxu0 0.0
    %746 = vmatmul.mubr.f32.gmra.mrb[0].mxu0 %v587
    %v747 = vpop.f32.mrb[0].mxu0
    %v748 = vadd.f32 0.0, %v747
    %v749 = vpop.f32.mrb[0].mxu0
    %750 = vmatprep.mubr.f32.mxu0 0.0
    %751 = vmatmul.mubr.f32.gmra.mrb[0].mxu0 %v592
    %v752 = vpop.f32.mrb[0].mxu0
    %v753 = vadd.f32 0.0, %v752
    %v754 = vpop.f32.mrb[0].mxu0
    %755 = vmatprep.mubr.f32.mxu0 0.0
    %756 = vmatmul.mubr.f32.gmra.mrb[0].mxu0 %v597
    %v757 = vpop.f32.mrb[0].mxu0
    %v758 = vadd.f32 0.0, %v757
    %v759 = vpop.f32.mrb[0].mxu0
    %760 = vmatprep.mubr.f32.mxu0 0.0
    %761 = vmatmul.mubr.f32.gmra.mrb[0].mxu0 %v602
    %v762 = vpop.f32.mrb[0].mxu0
    %v763 = vadd.f32 0.0, %v762
    %v764 = vpop.f32.mrb[0].mxu0
    %765 = vmatprep.mubr.f32.mxu0 0.0
    %766 = vmatmul.mubr.f32.gmra.mrb[0].mxu0 %v607
    %v767 = vpop.f32.mrb[0].mxu0
    %v768 = vadd.f32 0.0, %v767
    %v769 = vpop.f32.mrb[0].mxu0
    %770 = vmatprep.mubr.f32.mxu0 0.0
    %771 = vmatmul.mubr.f32.gmra.mrb[0].mxu0 %v612
    %v772 = vpop.f32.mrb[0].mxu0
    %v773 = vadd.f32 0.0, %v772
    %v774 = vpop.f32.mrb[0].mxu0
    %775 = vmatprep.mubr.f32.mxu0 0.0
    %776 = vmatmul.mubr.f32.gmra.mrb[0].mxu0 %v617
    %v777 = vpop.f32.mrb[0].mxu0
    %v778 = vadd.f32 0.0, %v777
    %v779 = vpop.f32.mrb[0].mxu0
    %780 = vmatprep.mubr.f32.mxu0 0.0
    %781 = vmatmul.mubr.f32.gmra.mrb[0].mxu0 %v622
    %v782 = vpop.f32.mrb[0].mxu0
    %v783 = vadd.f32 0.0, %v782
    %v784 = vpop.f32.mrb[0].mxu0
    %785 = vmatprep.mubr.f32.mxu0 0.0
    %786 = vmatmul.mubr.f32.gmra.mrb[0].mxu0 %v627
    %v787 = vpop.f32.mrb[0].mxu0
    %v788 = vadd.f32 0.0, %v787
    %v789 = vpop.f32.mrb[0].mxu0
    %790 = vdwg.mxu0
    %v791 = vld [vmem:[%s6] sm:$0x1]
    %v793 = vlaneseq
    %v794 = vshrl.u32 %v793, 7
    %v795 = vsub.s32 0, %v794
    %v796 = vrot.slane %v791, %v795
    %v798 = vmul.f32 %v713, %v796
    %v799 = vmul.f32 %v718, %v796
    %v800 = vmul.f32 %v723, %v796
    %v801 = vmul.f32 %v728, %v796
    %v802 = vmul.f32 %v733, %v796
    %v803 = vmul.f32 %v738, %v796
    %v804 = vmul.f32 %v743, %v796
    %v805 = vmul.f32 %v748, %v796
    %v806 = vmul.f32 %v753, %v796
    %v807 = vmul.f32 %v758, %v796
    %v808 = vmul.f32 %v763, %v796
    %v809 = vmul.f32 %v768, %v796
    %v810 = vmul.f32 %v773, %v796
    %v811 = vmul.f32 %v778, %v796
    %v812 = vmul.f32 %v783, %v796
    %v813 = vmul.f32 %v788, %v796
    %v814 = vld [vmem:[%s7] sm:$0x1]
    %v816 = vlaneseq
    %v817 = vshrl.u32 %v816, 7
    %v818 = vsub.s32 0, %v817
    %v819 = vrot.slane %v814, %v818
    %v821 = vadd.f32 %v798, %v819
    %v822 = vadd.f32 %v799, %v819
    %v823 = vadd.f32 %v800, %v819
    %v824 = vadd.f32 %v801, %v819
    %v825 = vadd.f32 %v802, %v819
    %v826 = vadd.f32 %v803, %v819
    %v827 = vadd.f32 %v804, %v819
    %v828 = vadd.f32 %v805, %v819
    %v829 = vadd.f32 %v806, %v819
    %v830 = vadd.f32 %v807, %v819
    %v831 = vadd.f32 %v808, %v819
    %v832 = vadd.f32 %v809, %v819
    %v833 = vadd.f32 %v810, %v819
    %v834 = vadd.f32 %v811, %v819
    %v835 = vadd.f32 %v812, %v819
    %v836 = vadd.f32 %v813, %v819
    %v837 = vmax.f32 %v821, 0.0
    %v838 = vmax.f32 %v822, 0.0
    %v839 = vmax.f32 %v823, 0.0
    %v840 = vmax.f32 %v824, 0.0
    %v841 = vmax.f32 %v825, 0.0
    %v842 = vmax.f32 %v826, 0.0
    %v843 = vmax.f32 %v827, 0.0
    %v844 = vmax.f32 %v828, 0.0
    %v845 = vmax.f32 %v829, 0.0
    %v846 = vmax.f32 %v830, 0.0
    %v847 = vmax.f32 %v831, 0.0
    %v848 = vmax.f32 %v832, 0.0
    %v849 = vmax.f32 %v833, 0.0
    %v850 = vmax.f32 %v834, 0.0
    %v851 = vmax.f32 %v835, 0.0
    %v852 = vmax.f32 %v836, 0.0
    %v853 = vadd.f32 %v837, %v101
    %v854 = vadd.f32 %v838, %v102
    %v855 = vadd.f32 %v839, %v103
    %v856 = vadd.f32 %v840, %v104
    %v857 = vadd.f32 %v841, %v105
    %v858 = vadd.f32 %v842, %v106
    %v859 = vadd.f32 %v843, %v107
    %v860 = vadd.f32 %v844, %v108
    %v861 = vadd.f32 %v845, %v109
    %v862 = vadd.f32 %v846, %v110
    %v863 = vadd.f32 %v847, %v111
    %v864 = vadd.f32 %v848, %v112
    %v865 = vadd.f32 %v849, %v113
    %v866 = vadd.f32 %v850, %v114
    %v867 = vadd.f32 %v851, %v115
    %v868 = vadd.f32 %v852, %v116
    %v869 = vmul.f32 %v853, 0.70710677
    %v870 = vmul.f32 %v854, 0.70710677
    %v871 = vmul.f32 %v855, 0.70710677
    %v872 = vmul.f32 %v856, 0.70710677
    %v873 = vmul.f32 %v857, 0.70710677
    %v874 = vmul.f32 %v858, 0.70710677
    %v875 = vmul.f32 %v859, 0.70710677
    %v876 = vmul.f32 %v860, 0.70710677
    %v877 = vmul.f32 %v861, 0.70710677
    %v878 = vmul.f32 %v862, 0.70710677
    %v879 = vmul.f32 %v863, 0.70710677
    %v880 = vmul.f32 %v864, 0.70710677
    %v881 = vmul.f32 %v865, 0.70710677
    %v882 = vmul.f32 %v866, 0.70710677
    %v883 = vmul.f32 %v867, 0.70710677
    %v884 = vmul.f32 %v868, 0.70710677
    %885 = vst [vmem:[#allocation10] sm:$0xff] %v869
    %886 = vst [vmem:[#allocation10 + $0x8] sm:$0xff] %v870
    %887 = vst [vmem:[#allocation10 + $0x10] sm:$0xff] %v871
    %888 = vst [vmem:[#allocation10 + $0x18] sm:$0xff] %v872
    %889 = vst [vmem:[#allocation10 + $0x20] sm:$0xff] %v873
    %890 = vst [vmem:[#allocation10 + $0x28] sm:$0xff] %v874
    %891 = vst [vmem:[#allocation10 + $0x30] sm:$0xff] %v875
    %892 = vst [vmem:[#allocation10 + $0x38] sm:$0xff] %v876
    %893 = vst [vmem:[#allocation10 + $0x40] sm:$0xff] %v877
    %894 = vst [vmem:[#allocation10 + $0x48] sm:$0xff] %v878
    %895 = vst [vmem:[#allocation10 + $0x50] sm:$0xff] %v879
    %896 = vst [vmem:[#allocation10 + $0x58] sm:$0xff] %v880
    %897 = vst [vmem:[#allocation10 + $0x60] sm:$0xff] %v881
    %898 = vst [vmem:[#allocation10 + $0x68] sm:$0xff] %v882
    %899 = vst [vmem:[#allocation10 + $0x70] sm:$0xff] %v883
    %900 = vst [vmem:[#allocation10 + $0x78] sm:$0xff] %v884
    // Predicated region
    $region50: #{tpu_custom_call.1} parent=1 // pred_check
      _
    $region51: #{tpu_custom_call.1} parent=1 // pred_check_branch
      %902 = sbr.rel (0) target = $region53
    $region52: #{tpu_custom_call.1} parent=1 // pred_region
      %s904 = ssub.s32 2048, 2048
      %905 = vsyncadd [#allocation4], %s904
      %s906 = sshll.u32 [#allocation10], 4
      %s907 = int_to_ptr.vmem [resolvable:$true] %s906
      %912 = dma.vmem_to_hbm [thread:$0]  %s907, 2048, %s8, [#allocation4], 128, 128, 8
    $region53: #{tpu_custom_call.1} parent=1 // pred_fallthru
      _
    // Predicated region
    $region54: #{tpu_custom_call.1} parent=1 // pred_check
      _
    $region55: #{tpu_custom_call.1} parent=1 // pred_check_branch
      %914 = sbr.rel (0) target = $region57
    $region56: #{tpu_custom_call.1} parent=1 // pred_region
      %915 = dma.done [#allocation4], 2048
    $region57: #{tpu_custom_call.1} parent=1 // pred_fallthru
      _
    %916 = vsyncpa [#allocation3], 1
    %917 = vsyncpa [#allocation6], 1
    %918 = vsyncpa [#allocation9], 1
    %919 = vsyncpa [#allocation4], 1

</llo_original>
